<compile_context>
chip_gen: v6e
topology: v6e:2x2x1
jax: 0.10.0
libtpu: 0.0.40
codegen_flags: <defaults>
</compile_context>

<pallas_src>
import jax
import jax.numpy as jnp
from jax.experimental import pallas as pl
from jax.experimental.pallas import tpu as pltpu


# ----------------------------- kernel ---------------------------------------


def rdecoder_kernel(x_ref, w1_ref, b1_ref, w2_ref, b2_ref, o_ref):
    # x_ref : [TB, LATENT]      f32 (cast to bf16 in-kernel; free VPU slot)
    # w1_ref: [LATENT, HIDDEN]  bf16   b1_ref: [1, HIDDEN]  f32
    # w2_ref: [HIDDEN, OUT]     bf16   b2_ref: [1, OUT]     f32
    # o_ref : [TB, OUT]         bf16 (or f32 if requested)
    x_bf = x_ref[...].astype(jnp.bfloat16)

    # stage 1: Linear + ReLU (hidden decoder layer) -- bf16 MXU, fp32 accum
    h = jnp.dot(x_bf, w1_ref[...], preferred_element_type=jnp.float32)
    h = jnp.maximum(h + b1_ref[...], 0.0)

    # stage 2: Linear (output decoder layer) -- bf16 MXU, fp32 accum
    y = jnp.dot(h.astype(jnp.bfloat16), w2_ref[...],
                preferred_element_type=jnp.float32)

    # final torch.nn.Sigmoid() -- fp32 epilogue (exp rides the EUP slot),
    # then cast to the (default bf16) output dtype on store.
    o_ref[...] = jax.nn.sigmoid(y + b2_ref[...]).astype(o_ref.dtype)


# ----------------------------- params ----------------------------------------


def prepare_rdecoder_params(w1, b1, w2, b2):
    """One-time parameter preparation (NOT in the per-call hot path).

    Weights -> bf16 (MXU-native), biases -> f32 2-D rows for the VMEM epilogue.
    """
    return (
        w1.astype(jnp.bfloat16),
        b1.astype(jnp.float32).reshape(1, -1),
        w2.astype(jnp.bfloat16),
        b2.astype(jnp.float32).reshape(1, -1),
    )


# ----------------------------- wrapper ---------------------------------------


def _cost_estimate(B, latent, hidden, out_dim, out_dtype):
    flops = 2 * B * (latent * hidden + hidden * out_dim)
    bytes_accessed = (
        B * latent * 4                            # x (f32 in HBM)
        + latent * hidden * 2 + hidden * out_dim * 2   # bf16 weights
        + hidden * 4 + out_dim * 4                      # f32 biases
        + B * out_dim * jnp.dtype(out_dtype).itemsize   # output
    )
    return pl.CostEstimate(flops=flops,
                           transcendentals=B * out_dim,
                           bytes_accessed=bytes_accessed)


def rdecoder_forward(x, params, *, batch_tile=1024, out_dtype=jnp.bfloat16):
    """x: [B, LATENT] f32.  params: output of prepare_rdecoder_params."""
    w1, b1, w2, b2 = params
    B, latent = x.shape
    hidden = w1.shape[1]
    out_dim = w2.shape[1]
    assert w1.shape == (latent, hidden)
    assert w2.shape == (hidden, out_dim)
    assert b1.shape == (1, hidden) and b2.shape == (1, out_dim)

    cost = _cost_estimate(B, latent, hidden, out_dim, out_dtype)

    if B <= batch_tile:
        # Small batch: no grid -> no pipeline machinery, no per-step
        # bookkeeping.  Whole (small) arrays live in VMEM for one invocation.
        return pl.pallas_call(
            rdecoder_kernel,
            out_shape=jax.ShapeDtypeStruct((B, out_dim), out_dtype),
            in_specs=[pl.BlockSpec(memory_space=pltpu.MemorySpace.VMEM)] * 5,
            out_specs=pl.BlockSpec(memory_space=pltpu.MemorySpace.VMEM),
            cost_estimate=cost,
        )(x, w1, b1, w2, b2)

    # Large batch: grid over batch tiles.  Because this path only triggers for
    # B > batch_tile, cdiv(B, batch_tile) >= 2, so the "parallel" batch axis
    # always gives v7x's two TensorCores at least one step each.  Weights and
    # biases use a constant block index -> VMEM-resident, no re-DMA.  A
    # non-divisible B is handled by the cdiv grid (Pallas masks the partial
    # last tile on writeback), so there is no whole-array VMEM fallback.
    grid = (pl.cdiv(B, batch_tile),)
    return pl.pallas_call(
        rdecoder_kernel,
        out_shape=jax.ShapeDtypeStruct((B, out_dim), out_dtype),
        grid=grid,
        in_specs=[
            pl.BlockSpec((batch_tile, latent), lambda i: (i, 0)),
            pl.BlockSpec((latent, hidden), lambda i: (0, 0)),
            pl.BlockSpec((1, hidden), lambda i: (0, 0)),
            pl.BlockSpec((hidden, out_dim), lambda i: (0, 0)),
            pl.BlockSpec((1, out_dim), lambda i: (0, 0)),
        ],
        out_specs=pl.BlockSpec((batch_tile, out_dim), lambda i: (i, 0)),
        compiler_params=pltpu.CompilerParams(
            dimension_semantics=("parallel",)
        ),
        cost_estimate=cost,
    )(x, w1, b1, w2, b2)


# ----------------------------- reference -------------------------------------


def rdecoder_reference(x, w1, b1, w2, b2):
    h = jnp.maximum(x @ w1 + b1.reshape(1, -1), 0.0)
    return jax.nn.sigmoid(h @ w2 + b2.reshape(1, -1))


# ----------------------------- main -------------------------------------------

if __name__ == "__main__":
    # decoder dims (encoder was OUT -> HIDDEN -> LATENT; decoder reverses it)
    B, LATENT, HIDDEN, OUT = 8, 32, 64, 128

    key = jax.random.PRNGKey(0)
    kx, kw1, kb1, kw2, kb2 = jax.random.split(key, 5)

    x = jax.random.normal(kx, (B, LATENT), dtype=jnp.float32)

    # deterministic synthetic parameters (nn.Linear-shaped, stored transposed
    # so the kernel computes x @ W directly)
    w1 = jax.random.normal(kw1, (LATENT, HIDDEN), dtype=jnp.float32) * 0.1
    b1 = jax.random.normal(kb1, (HIDDEN,), dtype=jnp.float32) * 0.1
    w2 = jax.random.normal(kw2, (HIDDEN, OUT), dtype=jnp.float32) * 0.1
    b2 = jax.random.normal(kb2, (OUT,), dtype=jnp.float32) * 0.1

    # one-time bf16 weight cast (never in the per-call hot path)
    params = prepare_rdecoder_params(w1, b1, w2, b2)

    # --- small-batch (grid-less) path ---
    y = jax.block_until_ready(rdecoder_forward(x, params))
    y_ref = rdecoder_reference(x, w1, b1, w2, b2)
    assert y.shape == (B, OUT) and y.dtype == jnp.bfloat16
    # bf16 MXU operands + bf16 output of a [0,1] sigmoid -> ~4e-3 abs error.
    assert jnp.allclose(y.astype(jnp.float32), y_ref, atol=2e-2, rtol=2e-2), \
        "mismatch vs reference (gridless path)"

    # --- batched path, divisible B (2-step grid -> v7x megacore split) ---
    B2 = 2048
    x2 = jax.random.normal(jax.random.PRNGKey(1), (B2, LATENT),
                           dtype=jnp.float32)
    y2 = jax.block_until_ready(rdecoder_forward(x2, params, batch_tile=1024))
    y2_ref = rdecoder_reference(x2, w1, b1, w2, b2)
    assert y2.shape == (B2, OUT)
    assert jnp.allclose(y2.astype(jnp.float32), y2_ref, atol=2e-2, rtol=2e-2), \
        "mismatch vs reference (gridded path, divisible B)"

    # --- batched path, NON-divisible B (cdiv grid + masked partial last tile) ---
    B3 = 2304
    x3 = jax.random.normal(jax.random.PRNGKey(2), (B3, LATENT),
                           dtype=jnp.float32)
    y3 = jax.block_until_ready(rdecoder_forward(x3, params, batch_tile=1024))
    y3_ref = rdecoder_reference(x3, w1, b1, w2, b2)
    assert y3.shape == (B3, OUT)
    assert jnp.allclose(y3.astype(jnp.float32), y3_ref, atol=2e-2, rtol=2e-2), \
        "mismatch vs reference (gridded path, ragged B)"

    # --- f32 output option still available for sensitive consumers ---
    y_f32 = jax.block_until_ready(
        rdecoder_forward(x, params, out_dtype=jnp.float32))
    assert y_f32.dtype == jnp.float32
    assert jnp.allclose(y_f32, y_ref, atol=1e-2, rtol=1e-2), \
        "mismatch vs reference (f32 output path)"

    print("KERNEL_OK")
</pallas_src>

<mosaic_0001>
module attributes {stable_mosaic.version = 11 : i64} {
  func.func @rdecoder_kernel(%arg0: memref<8x32xf32, #tpu.memory_space<vmem>>, %arg1: memref<32x64xbf16, #tpu.memory_space<vmem>>, %arg2: memref<1x64xf32, #tpu.memory_space<vmem>>, %arg3: memref<64x128xbf16, #tpu.memory_space<vmem>>, %arg4: memref<1x128xf32, #tpu.memory_space<vmem>>, %arg5: memref<8x128xbf16, #tpu.memory_space<vmem>>) attributes {dimension_semantics = [], scalar_prefetch = 0 : i64, scratch_operands = 0 : i64, tpu.core_type = #tpu.core_type<tc>} {
    %c0 = arith.constant 0 : index
    %c0_0 = arith.constant 0 : index
    %0 = vector.load %arg0[%c0, %c0_0] : memref<8x32xf32, #tpu.memory_space<vmem>>, vector<8x32xf32>
    %1 = arith.truncf %0 : vector<8x32xf32> to vector<8x32xbf16>
    %c0_1 = arith.constant 0 : index
    %c0_2 = arith.constant 0 : index
    %2 = vector.load %arg1[%c0_1, %c0_2] : memref<32x64xbf16, #tpu.memory_space<vmem>>, vector<32x64xbf16>
    %cst = arith.constant dense<0.000000e+00> : vector<8x64xf32>
    %3 = tpu.matmul %1, %2, %cst {dimension_numbers = #tpu.dot_dimension_numbers<[1], [0], [0], [1], [0, 0, 1, 1], [], []>} : vector<8x32xbf16>, vector<32x64xbf16>, vector<8x64xf32> -> vector<8x64xf32>
    %c0_3 = arith.constant 0 : index
    %c0_4 = arith.constant 0 : index
    %4 = vector.load %arg2[%c0_3, %c0_4] : memref<1x64xf32, #tpu.memory_space<vmem>>, vector<1x64xf32>
    %5 = vector.broadcast %4 : vector<1x64xf32> to vector<8x64xf32>
    %6 = arith.addf %3, %5 : vector<8x64xf32>
    %cst_5 = arith.constant 0.000000e+00 : f32
    %7 = vector.broadcast %cst_5 : f32 to vector<8x64xf32>
    %8 = arith.maximumf %6, %7 : vector<8x64xf32>
    %9 = arith.truncf %8 : vector<8x64xf32> to vector<8x64xbf16>
    %c0_6 = arith.constant 0 : index
    %c0_7 = arith.constant 0 : index
    %10 = vector.load %arg3[%c0_6, %c0_7] : memref<64x128xbf16, #tpu.memory_space<vmem>>, vector<64x128xbf16>
    %cst_8 = arith.constant dense<0.000000e+00> : vector<8x128xf32>
    %11 = tpu.matmul %9, %10, %cst_8 {dimension_numbers = #tpu.dot_dimension_numbers<[1], [0], [0], [1], [0, 0, 1, 1], [], []>} : vector<8x64xbf16>, vector<64x128xbf16>, vector<8x128xf32> -> vector<8x128xf32>
    %c0_9 = arith.constant 0 : index
    %c0_10 = arith.constant 0 : index
    %12 = vector.load %arg4[%c0_9, %c0_10] : memref<1x128xf32, #tpu.memory_space<vmem>>, vector<1x128xf32>
    %13 = vector.broadcast %12 : vector<1x128xf32> to vector<8x128xf32>
    %14 = arith.addf %11, %13 : vector<8x128xf32>
    %15 = arith.negf %14 : vector<8x128xf32>
    %16 = math.exp %15 : vector<8x128xf32>
    %cst_11 = arith.constant 1.000000e+00 : f32
    %17 = vector.broadcast %cst_11 : f32 to vector<8x128xf32>
    %18 = arith.addf %17, %16 : vector<8x128xf32>
    %19 = arith.divf %17, %18 : vector<8x128xf32>
    %20 = arith.truncf %19 : vector<8x128xf32> to vector<8x128xbf16>
    %c0_12 = arith.constant 0 : index
    %c0_13 = arith.constant 0 : index
    %21 = vector.load %arg5[%c0_12, %c0_13] : memref<8x128xbf16, #tpu.memory_space<vmem>>, vector<8x128xbf16>
    tpu.vector_store %arg5[%c0_12, %c0_13], %20 {strides = array<i32>} : memref<8x128xbf16, #tpu.memory_space<vmem>>, vector<8x128xbf16>,
    return
  }
}

</mosaic_0001>

<llo_original>
// kernel: tpu_custom_call.1
$region0: #{tpu_custom_call.1}
  #allocation0 [shape = 'u32[]', space=smem, size = 0x4, offset = 0x4, fixed_abs, tag = 'smem constant byte address 0x4 - core index']
  #allocation1 [shape = 'u32[144,128]{1,0:T(1,128)}', space=vmem, size = 0x12000, scoped, tag = 'internal scratch']
  %s0 = inlined_call_operand.hbm [shape: f32[8,32], index: 0, kind: input, shape index: {}]
  %s1 = inlined_call_operand.hbm [shape: bf16[32,64], index: 1, kind: input, shape index: {}]
  %s2 = inlined_call_operand.vmem [shape: f32[1,64], index: 2, kind: input, shape index: {}]
  %s3 = inlined_call_operand.hbm [shape: bf16[64,128], index: 3, kind: input, shape index: {}]
  %s4 = inlined_call_operand.vmem [shape: f32[1,128], index: 4, kind: input, shape index: {}]
  %s5 = inlined_call_operand.hbm [shape: bf16[8,128], index: 5, kind: output, shape index: {}]
  %s6 = sld [smem:[#allocation0]]
  $region42: #{tpu_custom_call.1} parent=0
    _
  %s8 = ssub.s32 1, %s6
  %s9 = scalar_select 0, %s8, %s6
  $region1: #{tpu_custom_call.1} parent=0
    #allocation2 [shape = 'u8[4096]{0}', space=vmem, size = 0x1000, scoped, tag = 'input window, operand 0, single buffered']
    #allocation3 [shape = 's32[1]{0}', space=sflag, size = 0x4, scoped, tag = 'scoped memory for tpu_custom_call.1']
    #allocation4 [shape = 's32[1]{0}', space=sflag, size = 0x4, scoped, tag = 'scoped memory for tpu_custom_call.1']
    #allocation5 [shape = 'u8[8192]{0}', space=vmem, size = 0x2000, scoped, tag = 'input window, operand 1, single buffered']
    #allocation6 [shape = 's32[1]{0}', space=sflag, size = 0x4, scoped, tag = 'scoped memory for tpu_custom_call.1']
    #allocation7 [shape = 'u8[16384]{0}', space=vmem, size = 0x4000, scoped, tag = 'input window, operand 3, single buffered']
    #allocation8 [shape = 'u8[2048]{0}', space=vmem, size = 0x800, scoped, tag = 'output window, operand 0, single buffered']
    %10 = vsyncpa [#allocation3], 0
    %11 = vsyncpa [#allocation6], 0
    %12 = vsyncpa [#allocation4], 0
    // Predicated region
    $region2: #{tpu_custom_call.1} parent=1 // pred_check
      _
    $region3: #{tpu_custom_call.1} parent=1 // pred_check_branch
      %14 = sbr.rel (0) target = $region5
    $region4: #{tpu_custom_call.1} parent=1 // pred_region
      %s16 = ssub.s32 128, 128
      %17 = vsyncadd [#allocation3], %s16
      %s19 = sshll.u32 [#allocation2], 4
      %s20 = int_to_ptr.vmem [resolvable:$true] %s19
      %22 = dma.hbm_to_vmem [thread:$0]  %s0, 128, %s20, [#allocation3]
    $region5: #{tpu_custom_call.1} parent=1 // pred_fallthru
      _
    // Predicated region
    $region6: #{tpu_custom_call.1} parent=1 // pred_check
      _
    $region7: #{tpu_custom_call.1} parent=1 // pred_check_branch
      %24 = sbr.rel (0) target = $region9
    $region8: #{tpu_custom_call.1} parent=1 // pred_region
      %s26 = ssub.s32 256, 256
      %27 = vsyncadd [#allocation6], %s26
      %s28 = sshll.u32 [#allocation5], 4
      %s29 = int_to_ptr.vmem [resolvable:$true] %s28
      %34 = dma.hbm_to_vmem [thread:$0]  %s1, 256, %s29, [#allocation6], 64, 64, 4
    $region9: #{tpu_custom_call.1} parent=1 // pred_fallthru
      _
    // Predicated region
    $region10: #{tpu_custom_call.1} parent=1 // pred_check
      _
    $region11: #{tpu_custom_call.1} parent=1 // pred_check_branch
      %36 = sbr.rel (0) target = $region13
    $region12: #{tpu_custom_call.1} parent=1 // pred_region
      _
    $region13: #{tpu_custom_call.1} parent=1 // pred_fallthru
      _
    // Predicated region
    $region14: #{tpu_custom_call.1} parent=1 // pred_check
      _
    $region15: #{tpu_custom_call.1} parent=1 // pred_check_branch
      %38 = sbr.rel (0) target = $region17
    $region16: #{tpu_custom_call.1} parent=1 // pred_region
      %s40 = ssub.s32 512, 512
      %41 = vsyncadd [#allocation6], %s40
      %s42 = sshll.u32 [#allocation7], 4
      %s43 = int_to_ptr.vmem [resolvable:$true] %s42
      %48 = dma.hbm_to_vmem [thread:$0]  %s3, 512, %s43, [#allocation6], 64, 64, 4
    $region17: #{tpu_custom_call.1} parent=1 // pred_fallthru
      _
    // Predicated region
    $region18: #{tpu_custom_call.1} parent=1 // pred_check
      _
    $region19: #{tpu_custom_call.1} parent=1 // pred_check_branch
      %50 = sbr.rel (0) target = $region21
    $region20: #{tpu_custom_call.1} parent=1 // pred_region
      _
    $region21: #{tpu_custom_call.1} parent=1 // pred_fallthru
      _
    // Predicated region
    $region22: #{tpu_custom_call.1} parent=1 // pred_check
      _
    $region23: #{tpu_custom_call.1} parent=1 // pred_check_branch
      %52 = sbr.rel (0) target = $region25
    $region24: #{tpu_custom_call.1} parent=1 // pred_region
      %53 = dma.done [#allocation3], 128
    $region25: #{tpu_custom_call.1} parent=1 // pred_fallthru
      _
    // Predicated region
    $region26: #{tpu_custom_call.1} parent=1 // pred_check
      _
    $region27: #{tpu_custom_call.1} parent=1 // pred_check_branch
      %55 = sbr.rel (0) target = $region29
    $region28: #{tpu_custom_call.1} parent=1 // pred_region
      %56 = dma.done [#allocation6], 256
    $region29: #{tpu_custom_call.1} parent=1 // pred_fallthru
      _
    // Predicated region
    $region30: #{tpu_custom_call.1} parent=1 // pred_check
      _
    $region31: #{tpu_custom_call.1} parent=1 // pred_check_branch
      %58 = sbr.rel (0) target = $region33
    $region32: #{tpu_custom_call.1} parent=1 // pred_region
      %59 = dma.done [#allocation6], 512
    $region33: #{tpu_custom_call.1} parent=1 // pred_fallthru
      _
    %v61 = vld [vmem:[#allocation2] sm:$0xff]
    %v62 = vpack.c.bf16 %v61, %v61
    %v63 = vld [vmem:[#allocation5] sm:$0xf]
    %v64 = vld [vmem:[#allocation5 + $0x4] sm:$0xf]
    %v65 = vld [vmem:[#allocation5 + $0x8] sm:$0xf]
    %v66 = vld [vmem:[#allocation5 + $0xc] sm:$0xf]
    %v67 = vld [vmem:[%s2] sm:$0x1]
    %v69 = vlaneseq
    %v70 = vshrl.u32 %v69, 7
    %v71 = vsub.s32 0, %v70
    %v72 = vrot.slane %v67, %v71
    %v78 = vunpack.c.l.b16 %v63
    %v79 = vunpack.c.l.b16 %v64
    %v80 = vunpack.c.l.b16 %v65
    %v81 = vunpack.c.l.b16 %v66
    %v82 = vpack.c.b16 %v79, %v78
    %v83 = vpack.c.b16 %v81, %v80
    %vm86 = vcmask 261120
    %v88 = vsel %vm86, %v62, 0
    %90 = vmatprep.subr.bf16.mxu0 0
    %91 = vmatpush1.bf16.msra.mxu0 0
    %92 = vmatprep.subr.bf16.mxu0 0
    %93 = vmatpush1.bf16.msra.mxu0 0
    %94 = vmatprep.subr.bf16.mxu0 0
    %95 = vmatpush1.bf16.msra.mxu0 0
    %96 = vmatprep.subr.bf16.mxu0 0
    %97 = vmatpush1.bf16.msra.mxu0 0
    %98 = vmatprep.subr.bf16.mxu0 0
    %99 = vmatpush1.bf16.msra.mxu0 0
    %100 = vmatprep.subr.bf16.mxu0 0
    %101 = vmatpush1.bf16.msra.mxu0 0
    %102 = vmatprep.subr.bf16.mxu0 0
    %103 = vmatpush1.bf16.msra.mxu0 %v83
    %104 = vmatprep.subr.bf16.mxu0 0
    %105 = vmatpush1.bf16.msra.mxu0 %v82
    %106 = vmatprep.subr.bf16.mxu0 0
    %107 = vmatpush2.bf16.msra.mxu0 0
    %108 = vmatprep.subr.bf16.mxu0 0
    %109 = vmatpush2.bf16.msra.mxu0 0
    %110 = vmatprep.subr.bf16.mxu0 0
    %111 = vmatpush2.bf16.msra.mxu0 0
    %112 = vmatprep.subr.bf16.mxu0 0
    %113 = vmatpush2.bf16.msra.mxu0 0
    %114 = vmatprep.subr.bf16.mxu0 0
    %115 = vmatpush2.bf16.msra.mxu0 0
    %116 = vmatprep.subr.bf16.mxu0 0
    %117 = vmatpush2.bf16.msra.mxu0 0
    %118 = vmatprep.subr.bf16.mxu0 0
    %119 = vmatpush2.bf16.msra.mxu0 0
    %120 = vmatprep.subr.bf16.mxu0 0
    %121 = vmatpush2.bf16.msra.mxu0 0
    %122 = vmatprep.mubr.bf16.mxu0 0
    %123 = vmatmul.mubr.bf16.gmra.mxu0 %v88
    %v124 = vpop.f32.mrf.mxu0
    %v125 = vadd.f32 %v72, %v124
    %v126 = vpop.f32.mrf.mxu0
    %v127 = vpop.f32.mrf.mxu0
    %v128 = vpop.f32.mrf.mxu0
    %129 = vdwg.mxu0
    %v130 = vmax.f32 %v125, 0.0
    %v131 = vpack.c.bf16 %v130, %v130
    %v132 = vld [vmem:[#allocation7] sm:$0xf]
    %v133 = vld [vmem:[#allocation7 + $0x4] sm:$0xf]
    %v134 = vld [vmem:[#allocation7 + $0x8] sm:$0xf]
    %v135 = vld [vmem:[#allocation7 + $0xc] sm:$0xf]
    %v136 = vld [vmem:[#allocation7 + $0x10] sm:$0xf]
    %v137 = vld [vmem:[#allocation7 + $0x14] sm:$0xf]
    %v138 = vld [vmem:[#allocation7 + $0x18] sm:$0xf]
    %v139 = vld [vmem:[#allocation7 + $0x1c] sm:$0xf]
    %v140 = vld [vmem:[%s4] sm:$0x1]
    %v142 = vlaneseq
    %v143 = vshrl.u32 %v142, 7
    %v144 = vsub.s32 0, %v143
    %v145 = vrot.slane %v140, %v144
    %v155 = vunpack.c.l.b16 %v132
    %v156 = vunpack.c.l.b16 %v133
    %v157 = vunpack.c.l.b16 %v134
    %v158 = vunpack.c.l.b16 %v135
    %v159 = vunpack.c.l.b16 %v136
    %v160 = vunpack.c.l.b16 %v137
    %v161 = vunpack.c.l.b16 %v138
    %v162 = vunpack.c.l.b16 %v139
    %v163 = vpack.c.b16 %v156, %v155
    %v164 = vpack.c.b16 %v158, %v157
    %v165 = vpack.c.b16 %v160, %v159
    %v166 = vpack.c.b16 %v162, %v161
    %vm171 = vcmask 523264
    %v173 = vsel %vm171, %v131, 0
    %175 = vmatprep.subr.bf16.mxu0 0
    %176 = vmatpush1.bf16.msra.mxu0 0
    %177 = vmatprep.subr.bf16.mxu0 0
    %178 = vmatpush1.bf16.msra.mxu0 0
    %179 = vmatprep.subr.bf16.mxu0 0
    %180 = vmatpush1.bf16.msra.mxu0 0
    %181 = vmatprep.subr.bf16.mxu0 0
    %182 = vmatpush1.bf16.msra.mxu0 0
    %183 = vmatprep.subr.bf16.mxu0 0
    %184 = vmatpush1.bf16.msra.mxu0 %v166
    %185 = vmatprep.subr.bf16.mxu0 0
    %186 = vmatpush1.bf16.msra.mxu0 %v165
    %187 = vmatprep.subr.bf16.mxu0 0
    %188 = vmatpush1.bf16.msra.mxu0 %v164
    %189 = vmatprep.subr.bf16.mxu0 0
    %190 = vmatpush1.bf16.msra.mxu0 %v163
    %191 = vmatprep.subr.bf16.mxu0 0
    %192 = vmatpush2.bf16.msra.mxu0 0
    %193 = vmatprep.subr.bf16.mxu0 0
    %194 = vmatpush2.bf16.msra.mxu0 0
    %195 = vmatprep.subr.bf16.mxu0 0
    %196 = vmatpush2.bf16.msra.mxu0 0
    %197 = vmatprep.subr.bf16.mxu0 0
    %198 = vmatpush2.bf16.msra.mxu0 0
    %199 = vmatprep.subr.bf16.mxu0 0
    %200 = vmatpush2.bf16.msra.mxu0 0
    %201 = vmatprep.subr.bf16.mxu0 0
    %202 = vmatpush2.bf16.msra.mxu0 0
    %203 = vmatprep.subr.bf16.mxu0 0
    %204 = vmatpush2.bf16.msra.mxu0 0
    %205 = vmatprep.subr.bf16.mxu0 0
    %206 = vmatpush2.bf16.msra.mxu0 0
    %207 = vmatprep.mubr.bf16.mxu0 0
    %208 = vmatmul.mubr.bf16.gmra.mxu0 %v173
    %v209 = vpop.f32.mrf.mxu0
    %v210 = vadd.f32 %v145, %v209
    %v211 = vpop.f32.mrf.mxu0
    %v212 = vpop.f32.mrf.mxu0
    %v213 = vpop.f32.mrf.mxu0
    %214 = vdwg.mxu0
    %v215 = vxor.u32 %v210, 2147483648
    %v216 = vmul.f32 %v215, 1.442695
    %v217 = vpow.pop %v216
    %v218 = vadd.f32 %v217, 1.0
    %v219 = vrcp.pop %v218
    %v220 = vmul.f32 1.0, %v219
    %v221 = vpack.c.bf16 %v220, %v220
    %222 = vst [vmem:[#allocation8] sm:$0xf] %v221
    // Predicated region
    $region34: #{tpu_custom_call.1} parent=1 // pred_check
      _
    $region35: #{tpu_custom_call.1} parent=1 // pred_check_branch
      %224 = sbr.rel (0) target = $region37
    $region36: #{tpu_custom_call.1} parent=1 // pred_region
      %s226 = ssub.s32 64, 64
      %227 = vsyncadd [#allocation4], %s226
      %s229 = sshll.u32 [#allocation8], 4
      %s230 = int_to_ptr.vmem [resolvable:$true] %s229
      %232 = dma.vmem_to_hbm [thread:$0]  %s230, 64, %s5, [#allocation4]
    $region37: #{tpu_custom_call.1} parent=1 // pred_fallthru
      _
    // Predicated region
    $region38: #{tpu_custom_call.1} parent=1 // pred_check
      _
    $region39: #{tpu_custom_call.1} parent=1 // pred_check_branch
      %234 = sbr.rel (0) target = $region41
    $region40: #{tpu_custom_call.1} parent=1 // pred_region
      %235 = dma.done [#allocation4], 64
    $region41: #{tpu_custom_call.1} parent=1 // pred_fallthru
      _
    %236 = vsyncpa [#allocation3], 1
    %237 = vsyncpa [#allocation6], 1
    %238 = vsyncpa [#allocation4], 1

</llo_original>
